<compile_context>
chip_gen: v5e
topology: v5e:2x2
jax: 0.10.0
libtpu: 0.0.40
codegen_flags: <defaults>
</compile_context>

<pallas_src>
import jax
import jax.numpy as jnp
from jax.experimental import pallas as pl
from jax.experimental.pallas import tpu as pltpu


_LANE = 128
_TM_MAX = 512
_TN_MAX = 512
_TK_MAX = 512
_K_COLLAPSE_MAX = 2048                    # max padded K for the single-pass kernel
_VMEM_BUDGET = 40 * 1024 * 1024           # stay well under v7x's 64 MiB VMEM
_VMEM_LIMIT_CAP = 48 * 1024 * 1024


def _round_up(v, m):
    return ((v + m - 1) // m) * m


def _cdiv(a, b):
    return (a + b - 1) // b


def _sublane(dtype):
    # dtype-correct sublane multiple: f32 -> 8, bf16/f16 -> 16, int8/fp8 -> 32.
    return {4: 8, 2: 16, 1: 32}.get(jnp.dtype(dtype).itemsize, 8)


# ---------------------------------------------------------------------------
# Kernels
# ---------------------------------------------------------------------------
def _linear_kernel_fused_k(x_ref, w_ref, b_ref, o_ref):
    """Single-pass tile: full K resident in VMEM, no accumulator scratch."""
    acc = jnp.dot(x_ref[...], w_ref[...], preferred_element_type=jnp.float32)
    o_ref[...] = (acc + b_ref[...].astype(jnp.float32)).astype(o_ref.dtype)


def _linear_kernel_tiled_k_f32out(x_ref, w_ref, b_ref, o_ref):
    """K-tiled, f32 output: accumulate directly into o_ref (no scratch)."""
    k = pl.program_id(2)

    @pl.when(k == 0)
    def _():
        o_ref[...] = jnp.broadcast_to(b_ref[...].astype(jnp.float32), o_ref.shape)

    o_ref[...] += jnp.dot(x_ref[...], w_ref[...], preferred_element_type=jnp.float32)


def _linear_kernel_tiled_k(x_ref, w_ref, b_ref, o_ref, acc_ref):
    """K-tiled, non-f32 output: f32 VMEM accumulator, bias folded into init."""
    k = pl.program_id(2)

    @pl.when(k == 0)
    def _():
        acc_ref[...] = jnp.broadcast_to(b_ref[...].astype(jnp.float32), acc_ref.shape)

    acc_ref[...] += jnp.dot(x_ref[...], w_ref[...], preferred_element_type=jnp.float32)

    @pl.when(k == pl.num_programs(2) - 1)
    def _():
        o_ref[...] = acc_ref[...].astype(o_ref.dtype)


# ---------------------------------------------------------------------------
# Tile selection
# ---------------------------------------------------------------------------
def _choose_tiles(M, K, N, x_dtype, w_dtype, out_dtype):
    sl = _sublane(x_dtype)
    x_it = jnp.dtype(x_dtype).itemsize
    w_it = jnp.dtype(w_dtype).itemsize
    o_it = jnp.dtype(out_dtype).itemsize

    # M: minimize padding waste; grid_m == 1 (one weight pass) whenever M <= 512.
    grid_m = _cdiv(M, _TM_MAX)
    tm = _round_up(_cdiv(M, grid_m), sl)

    # N: lane-dense multiples of 128, up to 512.
    grid_n = _cdiv(N, _TN_MAX)
    tn = _round_up(_cdiv(N, grid_n), _LANE)

    # v7x: guarantee >= 2 parallel output tiles so the 2nd TensorCore isn't idle.
    if grid_m * grid_n == 1:
        if tn >= 256 and tn % 256 == 0:
            tn //= 2
            grid_n = 2
        elif tm >= 2 * sl and tm % (2 * sl) == 0:
            tm //= 2
            grid_m = 2

    # K: collapse to a single pass when the full-K working set fits VMEM.
    k_pad_min = _round_up(K, _LANE)
    fused_fp = (2 * (tm * k_pad_min * x_it + k_pad_min * tn * w_it)
                + 2 * tm * tn * o_it)
    if k_pad_min <= _K_COLLAPSE_MAX and fused_fp <= _VMEM_BUDGET:
        tk, grid_k = k_pad_min, 1
    else:
        grid_k = _cdiv(K, _TK_MAX)
        tk = _round_up(_cdiv(K, grid_k), _LANE)

    return tm, tn, tk, grid_m, grid_n, grid_k


# ---------------------------------------------------------------------------
# Wrapper
# ---------------------------------------------------------------------------
def target_input_layer(x, weight_t, bias):
    """y = x @ weight_t + bias  (equivalent to nn.Linear forward).

    x:        (B, input_dim)
    weight_t: (input_dim, hidden_dim)   -- transpose of PyTorch's weight
    bias:     (hidden_dim,) or (1, hidden_dim)
    """
    M, K = x.shape
    K2, N = weight_t.shape
    assert K == K2, "x / weight_t inner dims mismatch"
    bias = bias.reshape(1, N)
    out_dtype = x.dtype

    # Tiny / decode-style problems: fused XLA beats custom-call + grid overhead.
    if M * N <= 32 * _LANE:
        acc = jnp.dot(x, weight_t, preferred_element_type=jnp.float32)
        return (acc + bias.astype(jnp.float32)).astype(out_dtype)

    tm, tn, tk, gm, gn, gk = _choose_tiles(M, K, N, x.dtype, weight_t.dtype, out_dtype)
    M_pad, N_pad, K_pad = gm * tm, gn * tn, gk * tk

    # NOTE: for a long-lived layer, pre-pad weight_t/bias once at init so this
    # full-weight jnp.pad does not recur per call (it is a no-op when input_dim
    # and hidden_dim are already multiples of 128, the common case).
    if (M_pad, K_pad) != (M, K):
        x = jnp.pad(x, ((0, M_pad - M), (0, K_pad - K)))
    if (K_pad, N_pad) != (K, N):
        weight_t = jnp.pad(weight_t, ((0, K_pad - K), (0, N_pad - N)))
    if N_pad != N:
        bias = jnp.pad(bias, ((0, 0), (0, N_pad - N)))

    x_it = jnp.dtype(x.dtype).itemsize
    w_it = jnp.dtype(weight_t.dtype).itemsize
    b_it = jnp.dtype(bias.dtype).itemsize
    o_it = jnp.dtype(out_dtype).itemsize

    # Operand bytes count re-streaming: x read once per N-tile, W once per M-tile.
    cost = pl.CostEstimate(
        flops=2 * M_pad * K_pad * N_pad,
        transcendentals=0,
        bytes_accessed=(x_it * M_pad * K_pad * gn
                        + w_it * K_pad * N_pad * gm
                        + b_it * N_pad * gm
                        + o_it * M_pad * N_pad),
    )

    use_acc_scratch = (gk > 1) and (out_dtype != jnp.float32)
    footprint = (2 * tm * tk * x_it + 2 * tk * tn * w_it + 2 * tn * b_it
                 + 2 * tm * tn * o_it + (tm * tn * 4 if use_acc_scratch else 0))
    vmem_limit = int(min(max(footprint * 3 // 2 + (2 << 20), 16 << 20),
                         _VMEM_LIMIT_CAP))

    if gk == 1:
        grid = (gm, gn)
        kernel = _linear_kernel_fused_k
        in_specs = [
            pl.BlockSpec((tm, tk), lambda i, j: (i, 0)),   # x tile (full K)
            pl.BlockSpec((tk, tn), lambda i, j: (0, j)),   # W tile (full K)
            pl.BlockSpec((1, tn), lambda i, j: (0, j)),    # bias tile
        ]
        out_specs = pl.BlockSpec((tm, tn), lambda i, j: (i, j))
        scratch_shapes = []
        semantics = ("parallel", "parallel")
    else:
        grid = (gm, gn, gk)
        in_specs = [
            pl.BlockSpec((tm, tk), lambda i, j, k: (i, k)),   # x tile
            pl.BlockSpec((tk, tn), lambda i, j, k: (k, j)),   # W tile
            pl.BlockSpec((1, tn), lambda i, j, k: (0, j)),    # bias tile
        ]
        out_specs = pl.BlockSpec((tm, tn), lambda i, j, k: (i, j))
        semantics = ("parallel", "parallel", "arbitrary")
        if use_acc_scratch:
            kernel = _linear_kernel_tiled_k
            scratch_shapes = [pltpu.VMEM((tm, tn), jnp.float32)]
        else:
            kernel = _linear_kernel_tiled_k_f32out
            scratch_shapes = []

    out = pl.pallas_call(
        kernel,
        out_shape=jax.ShapeDtypeStruct((M_pad, N_pad), out_dtype),
        grid_spec=pltpu.PrefetchScalarGridSpec(
            num_scalar_prefetch=0,
            grid=grid,
            in_specs=in_specs,
            out_specs=out_specs,
            scratch_shapes=scratch_shapes,
        ),
        compiler_params=pltpu.CompilerParams(
            dimension_semantics=semantics,
            vmem_limit_bytes=vmem_limit,
        ),
        cost_estimate=cost,
    )(x, weight_t, bias)

    if (M_pad, N_pad) != (M, N):
        out = out[:M, :N]
    return out


# ---------------------------------------------------------------------------
# Parameter init matching nn.Linear (U(-1/sqrt(in), 1/sqrt(in)))
# ---------------------------------------------------------------------------
def init_linear_params(key, input_dim, hidden_dim, dtype=jnp.float32):
    kw, kb = jax.random.split(key)
    bound = 1.0 / float(input_dim) ** 0.5
    # PyTorch weight is (hidden_dim, input_dim); store its transpose for the kernel.
    w = jax.random.uniform(kw, (hidden_dim, input_dim), minval=-bound, maxval=bound)
    b = jax.random.uniform(kb, (hidden_dim,), minval=-bound, maxval=bound)
    return w.T.astype(dtype), b.reshape(1, hidden_dim).astype(dtype)


# ---------------------------------------------------------------------------
# Demo / correctness check
# ---------------------------------------------------------------------------
if __name__ == "__main__":
    key = jax.random.PRNGKey(0)

    def _check(batch, input_dim, hidden_dim, k, dtype=jnp.float32, tol=2e-3):
        kx, kp = jax.random.split(k)
        x = jax.random.normal(kx, (batch, input_dim), dtype=jnp.float32).astype(dtype)
        w_t, b = init_linear_params(kp, input_dim, hidden_dim, dtype=dtype)
        y = jax.block_until_ready(target_input_layer(x, w_t, b))
        ref = (x.astype(jnp.float32) @ w_t.astype(jnp.float32)
               + b.astype(jnp.float32).reshape(1, -1))
        assert y.shape == (batch, hidden_dim)
        assert y.dtype == jnp.dtype(dtype)
        assert jnp.allclose(y.astype(jnp.float32), ref, atol=tol, rtol=tol), (
            f"mismatch at ({batch},{input_dim},{hidden_dim}) dtype={dtype}"
        )

    ks = jax.random.split(key, 5)
    # Aligned shape: single-pass (collapsed-K) kernel, tn split for 2 parallel tiles.
    _check(128, 256, 512, ks[0])
    # Ragged shape: zero-pad + slice path, single output tile.
    _check(24, 200, 312, ks[1])
    # Large K: K-tiled path with direct f32 accumulation into the output tile.
    _check(64, 2304, 256, ks[2])
    # Large K + bf16: K-tiled path with f32 VMEM accumulator scratch.
    _check(32, 2304, 256, ks[3], dtype=jnp.bfloat16, tol=3e-2)
    # Tiny shape: XLA fallback (custom-call overhead would dominate).
    _check(2, 16, 32, ks[4])

    print("KERNEL_OK")
</pallas_src>

<mosaic_0001>
module attributes {stable_mosaic.version = 11 : i64} {
  func.func @_linear_kernel_fused_k(%arg0: i32, %arg1: i32, %arg2: memref<128x256xf32, #tpu.memory_space<vmem>>, %arg3: memref<256x256xf32, #tpu.memory_space<vmem>>, %arg4: memref<1x256xf32, #tpu.memory_space<vmem>>, %arg5: memref<128x256xf32, #tpu.memory_space<vmem>>) attributes {dimension_semantics = [#tpu.dimension_semantics<parallel>, #tpu.dimension_semantics<parallel>], iteration_bounds = array<i64: 1, 2>, scalar_prefetch = 0 : i64, scratch_operands = 0 : i64, tpu.core_type = #tpu.core_type<tc>, window_params = [{transform_indices = @transform_0, window_bounds = array<i64: 128, 256>}, {transform_indices = @transform_1, window_bounds = array<i64: 256, 256>}, {transform_indices = @transform_2, window_bounds = array<i64: 1, 256>}, {transform_indices = @transform_3, window_bounds = array<i64: 128, 256>}]} {
    %c0 = arith.constant 0 : index
    %c0_0 = arith.constant 0 : index
    %0 = vector.load %arg2[%c0, %c0_0] : memref<128x256xf32, #tpu.memory_space<vmem>>, vector<128x256xf32>
    %c0_1 = arith.constant 0 : index
    %c0_2 = arith.constant 0 : index
    %1 = vector.load %arg3[%c0_1, %c0_2] : memref<256x256xf32, #tpu.memory_space<vmem>>, vector<256x256xf32>
    %cst = arith.constant dense<0.000000e+00> : vector<128x256xf32>
    %2 = tpu.matmul %0, %1, %cst {dimension_numbers = #tpu.dot_dimension_numbers<[1], [0], [0], [1], [0, 0, 1, 1], [], []>} : vector<128x256xf32>, vector<256x256xf32>, vector<128x256xf32> -> vector<128x256xf32>
    %c0_3 = arith.constant 0 : index
    %c0_4 = arith.constant 0 : index
    %3 = vector.load %arg4[%c0_3, %c0_4] : memref<1x256xf32, #tpu.memory_space<vmem>>, vector<1x256xf32>
    %4 = vector.broadcast %3 : vector<1x256xf32> to vector<128x256xf32>
    %5 = arith.addf %2, %4 : vector<128x256xf32>
    %c0_5 = arith.constant 0 : index
    %c0_6 = arith.constant 0 : index
    %6 = vector.load %arg5[%c0_5, %c0_6] : memref<128x256xf32, #tpu.memory_space<vmem>>, vector<128x256xf32>
    tpu.vector_store %arg5[%c0_5, %c0_6], %5 {strides = array<i32>} : memref<128x256xf32, #tpu.memory_space<vmem>>, vector<128x256xf32>,
    return
  }
  func.func @transform_0(%arg0: i32, %arg1: i32) -> (i32, i32) {
    %c0_i32 = arith.constant 0 : i32
    %c0_i32_0 = arith.constant 0 : i32
    return %arg0, %c0_i32 : i32, i32
  }
  func.func @transform_1(%arg0: i32, %arg1: i32) -> (i32, i32) {
    %c0_i32 = arith.constant 0 : i32
    %c0_i32_0 = arith.constant 0 : i32
    return %c0_i32, %arg1 : i32, i32
  }
  func.func @transform_2(%arg0: i32, %arg1: i32) -> (i32, i32) {
    %c0_i32 = arith.constant 0 : i32
    %c0_i32_0 = arith.constant 0 : i32
    return %c0_i32, %arg1 : i32, i32
  }
  func.func @transform_3(%arg0: i32, %arg1: i32) -> (i32, i32) {
    %c0_i32 = arith.constant 0 : i32
    return %arg0, %arg1 : i32, i32
  }
}

</mosaic_0001>

<llo_original>
// kernel: tpu_custom_call.1
$region0: #{tpu_custom_call.1}
  #allocation0 [shape = 'u32[]', space=smem, size = 0x4, offset = 0x4, fixed_abs, tag = 'smem constant byte address 0x4 - core index']
  #allocation1 [shape = 'u32[72,128]{1,0:T(1,128)}', space=vmem, size = 0x9000, scoped, tag = 'internal scratch']
  %s0 = inlined_call_operand.hbm [shape: f32[128,256], index: 0, kind: input, shape index: {}]
  %s1 = inlined_call_operand.hbm [shape: f32[256,512], index: 1, kind: input, shape index: {}]
  %s2 = inlined_call_operand.hbm [shape: f32[1,512], index: 2, kind: input, shape index: {}]
  %s3 = inlined_call_operand.hbm [shape: f32[128,512], index: 3, kind: output, shape index: {}]
  %s4 = sld [smem:[#allocation0]]
  $region57: #{tpu_custom_call.1} parent=0
    _
  %s6 = ssub.s32 1, %s4
  %s7 = scalar_select 0, %s6, %s4
  $region1: #{tpu_custom_call.1} parent=0
    #allocation2 [shape = 'u8[131072]{0}', space=vmem, size = 0x20000, scoped, tag = 'input window, operand 0, single buffered']
    #allocation3 [shape = 's32[2]{0}', space=sflag, size = 0x8, scoped, tag = 'scoped memory for tpu_custom_call.1']
    #allocation4 [shape = 's32[2]{0}', space=sflag, size = 0x8, scoped, tag = 'scoped memory for tpu_custom_call.1']
    #allocation5 [shape = 'u8[524288]{0}', space=vmem, size = 0x80000, scoped, tag = 'input window, operand 1']
    #allocation6 [shape = 's32[2]{0}', space=sflag, size = 0x8, scoped, tag = 'scoped memory for tpu_custom_call.1']
    #allocation7 [shape = 'u8[2048]{0}', space=vmem, size = 0x800, scoped, tag = 'input window, operand 2']
    #allocation8 [shape = 'u8[262144]{0}', space=vmem, size = 0x40000, scoped, tag = 'output window, operand 0']
    %8 = vsyncpa [#allocation3], 0
    %9 = vsyncpa [#allocation6], 0
    %s10 = scalar_lea.sflag [#allocation6], 1
    %11 = vsyncpa %s10, 0
    %12 = vsyncpa [#allocation4], 0
    %s13 = scalar_lea.sflag [#allocation4], 1
    %14 = vsyncpa %s13, 0
    loop: start=0, step=1, limit=4
    $region2: #{tpu_custom_call.1} parent=1 // loop_pre_header
      _
    $region3: #{tpu_custom_call.1} parent=1 // loop_header
      %s16 = sphi 0, %s20
      %p17 = scmp.ge.s32.totalorder %s16, 4
      %s23 = sphi 0, %s35
      %s24 = sphi 0, %s31
      %s25 = sphi 0, %s23
      %s26 = sphi 0, %s24
      %s27 = sphi 0, %s25
      %s28 = sphi 0, %s26
      %s38 = sphi 0, %s40
      %s41 = sphi 0, %s38
      %s42 = sphi 0, %s41
      %s58 = sphi 0, %s42
      %s64 = sphi 0, %s66
      %s67 = sphi 0, %s64
      %s68 = sphi 0, %s67
      %s84 = sphi 0, %s68
      %s90 = sphi 0, %s92
      %s93 = sphi 0, %s90
      %s94 = sphi 0, %s93
      %s110 = sphi 0, %s94
      %s118 = sphi 0, %s120
      %s121 = sphi 0, %s118
      %s122 = sphi 0, %s121
      %s138 = sphi 0, %s122
    $region4: #{tpu_custom_call.1} parent=1 // loop_header_branch
      %19 = sbr.rel (%p17) target = $region8
    $region5: #{tpu_custom_call.1} parent=1 // loop_body
      %s21 = ssub.s32 %s16, 1
      %s22 = ssub.s32 %s16, 2
      %s29 = sadd.s32 1, %s24
      %p30 = scmp.ge.s32.totalorder %s29, 2
      %s31 = scalar_select %p30, 0, %s29
      %s32 = sadd.s32 1, %s23
      %s33 = scalar_select %p30, %s32, %s23
      %p34 = scmp.ge.s32.totalorder %s33, 1
      %s35 = scalar_select %p34, 0, %s33
      %s36 = ssub.s32 %s23, %s35
      %p37 = scmp.eq.s32.totalorder %s36, 0
      %s39 = sadd.s32 %s38, 1
      %s40 = scalar_select %p37, %s38, %s39
      %p43 = pneg %p37
      %p44 = scmp.eq.s32.totalorder %s16, 1
      %p45 = por %p43, %p44
      %p46 = scmp.ne.s32.totalorder %s38, %s41
      %p47 = scmp.eq.s32.totalorder %s16, 0
      %p48 = por %p46, %p47
      %p49 = scmp.ne.s32.totalorder %s38, %s41
      %p50 = scmp.eq.s32.totalorder %s21, 1
      %p51 = por %p49, %p50
      %p52 = scmp.ne.s32.totalorder %s41, %s42
      %p53 = scmp.eq.s32.totalorder %s21, 0
      %p54 = por %p52, %p53
      %p55 = scmp.ne.s32.totalorder %s41, %s42
      %p56 = scmp.eq.s32.totalorder %s22, 1
      %p57 = por %p55, %p56
      %p59 = scmp.ne.s32.totalorder %s42, %s58
      %p60 = scmp.eq.s32.totalorder %s22, 0
      %p61 = por %p59, %p60
      %s62 = ssub.s32 %s24, %s31
      %p63 = scmp.eq.s32.totalorder %s62, 0
      %s65 = sadd.s32 %s64, 1
      %s66 = scalar_select %p63, %s64, %s65
      %p69 = pneg %p63
      %p70 = scmp.eq.s32.totalorder %s16, 1
      %p71 = por %p69, %p70
      %p72 = scmp.ne.s32.totalorder %s64, %s67
      %p73 = scmp.eq.s32.totalorder %s16, 0
      %p74 = por %p72, %p73
      %p75 = scmp.ne.s32.totalorder %s64, %s67
      %p76 = scmp.eq.s32.totalorder %s21, 1
      %p77 = por %p75, %p76
      %p78 = scmp.ne.s32.totalorder %s67, %s68
      %p79 = scmp.eq.s32.totalorder %s21, 0
      %p80 = por %p78, %p79
      %p81 = scmp.ne.s32.totalorder %s67, %s68
      %p82 = scmp.eq.s32.totalorder %s22, 1
      %p83 = por %p81, %p82
      %p85 = scmp.ne.s32.totalorder %s68, %s84
      %p86 = scmp.eq.s32.totalorder %s22, 0
      %p87 = por %p85, %p86
      %s88 = ssub.s32 %s24, %s31
      %p89 = scmp.eq.s32.totalorder %s88, 0
      %s91 = sadd.s32 %s90, 1
      %s92 = scalar_select %p89, %s90, %s91
      %p95 = pneg %p89
      %p96 = scmp.eq.s32.totalorder %s16, 1
      %p97 = por %p95, %p96
      %p98 = scmp.ne.s32.totalorder %s90, %s93
      %p99 = scmp.eq.s32.totalorder %s16, 0
      %p100 = por %p98, %p99
      %p101 = scmp.ne.s32.totalorder %s90, %s93
      %p102 = scmp.eq.s32.totalorder %s21, 1
      %p103 = por %p101, %p102
      %p104 = scmp.ne.s32.totalorder %s93, %s94
      %p105 = scmp.eq.s32.totalorder %s21, 0
      %p106 = por %p104, %p105
      %p107 = scmp.ne.s32.totalorder %s93, %s94
      %p108 = scmp.eq.s32.totalorder %s22, 1
      %p109 = por %p107, %p108
      %p111 = scmp.ne.s32.totalorder %s94, %s110
      %p112 = scmp.eq.s32.totalorder %s22, 0
      %p113 = por %p111, %p112
      %s114 = ssub.s32 %s23, %s35
      %s115 = ssub.s32 %s24, %s31
      %s116 = sor.u32 %s114, %s115
      %p117 = scmp.eq.s32.totalorder %s116, 0
      %s119 = sadd.s32 %s118, 1
      %s120 = scalar_select %p117, %s118, %s119
      %p123 = pneg %p117
      %p124 = scmp.eq.s32.totalorder %s16, 1
      %p125 = por %p123, %p124
      %p126 = scmp.ne.s32.totalorder %s118, %s121
      %p127 = scmp.eq.s32.totalorder %s16, 0
      %p128 = por %p126, %p127
      %p129 = scmp.ne.s32.totalorder %s118, %s121
      %p130 = scmp.eq.s32.totalorder %s21, 1
      %p131 = por %p129, %p130
      %p132 = scmp.ne.s32.totalorder %s121, %s122
      %p133 = scmp.eq.s32.totalorder %s21, 0
      %p134 = por %p132, %p133
      %p135 = scmp.ne.s32.totalorder %s121, %s122
      %p136 = scmp.eq.s32.totalorder %s22, 1
      %p137 = por %p135, %p136
      %p139 = scmp.ne.s32.totalorder %s122, %s138
      %p140 = scmp.eq.s32.totalorder %s22, 0
      %p141 = por %p139, %p140
      %p142 = scmp.le.s32.totalorder 1, %s16
      %p143 = scmp.lt.s32.totalorder %s16, 3
      %p144 = pnand %p142, %p143
      %p145 = pneg %p144
      // Predicated region
      $region9: #{tpu_custom_call.1} parent=5 // pred_check
        _
      $region10: #{tpu_custom_call.1} parent=5 // pred_check_branch
        %147 = sbr.rel (%p144) target = $region12
      $region11: #{tpu_custom_call.1} parent=5 // pred_region
        %s148 = ssub.s32 %s16, 1
        // Predicated region
        $region13: #{tpu_custom_call.1} parent=11 // pred_check
          %p149 = pneg %p54
        $region14: #{tpu_custom_call.1} parent=11 // pred_check_branch
          %151 = sbr.rel (%p149) target = $region16
        $region15: #{tpu_custom_call.1} parent=11 // pred_region
          %s152 = smul.u32 16, %s25
          %154 = vsyncadd [#allocation3], 0
          %s155 = smul.addr %s152, 2
          %s156 = smul.addr %s155, 8
          %s157 = scalar_lea.hbm %s0, %s156
          %s158 = sshll.u32 %s157, 4
          %s159 = int_to_ptr.hbm [resolvable:$true] %s158
          %s160 = sshll.u32 [#allocation2], 4
          %s161 = int_to_ptr.vmem [resolvable:$true] %s160
          %166 = dma.hbm_to_vmem [thread:$0]  %s159, 4096, %s161, [#allocation3], 256, 256, 16
        $region16: #{tpu_custom_call.1} parent=11 // pred_fallthru
          _
      $region12: #{tpu_custom_call.1} parent=5 // pred_fallthru
        _
      %p167 = scmp.lt.s32.totalorder %s16, 2
      // Predicated region
      $region17: #{tpu_custom_call.1} parent=5 // pred_check
        %p168 = pneg %p167
      $region18: #{tpu_custom_call.1} parent=5 // pred_check_branch
        %170 = sbr.rel (%p168) target = $region20
      $region19: #{tpu_custom_call.1} parent=5 // pred_region
        // Predicated region
        $region21: #{tpu_custom_call.1} parent=19 // pred_check
          %p171 = pneg %p74
        $region22: #{tpu_custom_call.1} parent=19 // pred_check_branch
          %173 = sbr.rel (%p171) target = $region24
        $region23: #{tpu_custom_call.1} parent=19 // pred_region
          %s174 = sand.u32 %s16, 1
          %s175 = scalar_lea.sflag [#allocation6], %s174
          %s176 = sand.u32 %s64, 1
          %s177 = smul.addr %s176, 512
          %s178 = scalar_lea.vmem [#allocation5], %s177
          %s179 = smul.u32 2, %s24
          %181 = vsyncadd %s175, 0
          %s182 = smul.addr %s179, 8
          %s183 = scalar_lea.hbm %s1, %s182
          %s184 = sshll.u32 %s183, 4
          %s185 = int_to_ptr.hbm [resolvable:$true] %s184
          %s186 = sshll.u32 %s178, 4
          %s187 = int_to_ptr.vmem [resolvable:$true] %s186
          %192 = dma.hbm_to_vmem [thread:$0]  %s185, 8192, %s187, %s175, 512, 256, 16
        $region24: #{tpu_custom_call.1} parent=19 // pred_fallthru
          _
        // Predicated region
        $region25: #{tpu_custom_call.1} parent=19 // pred_check
          %p193 = pneg %p100
        $region26: #{tpu_custom_call.1} parent=19 // pred_check_branch
          %195 = sbr.rel (%p193) target = $region28
        $region27: #{tpu_custom_call.1} parent=19 // pred_region
          %s196 = sand.u32 %s16, 1
          %s197 = scalar_lea.sflag [#allocation6], %s196
          %s198 = sand.u32 %s90, 1
          %s199 = smul.addr %s198, 2
          %s200 = scalar_lea.vmem [#allocation7], %s199
          %s201 = smul.u32 2, %s24
          %203 = vsyncadd %s197, 0
          %s204 = scalar_lea.hbm %s2, %s201
          %s206 = sshll.u32 %s204, 4
          %s207 = int_to_ptr.hbm [resolvable:$true] %s206
          %s208 = sshll.u32 %s200, 4
          %s209 = int_to_ptr.vmem [resolvable:$true] %s208
          %211 = dma.hbm_to_vmem [thread:$0]  %s207, 32, %s209, %s197
        $region28: #{tpu_custom_call.1} parent=19 // pred_fallthru
          _
      $region20: #{tpu_custom_call.1} parent=5 // pred_fallthru
        _
      %p212 = scmp.le.s32.totalorder 1, %s16
      %p213 = scmp.lt.s32.totalorder %s16, 3
      %p214 = pnand %p212, %p213
      %p215 = pneg %p214
      // Predicated region
      $region29: #{tpu_custom_call.1} parent=5 // pred_check
        _
      $region30: #{tpu_custom_call.1} parent=5 // pred_check_branch
        %217 = sbr.rel (%p214) target = $region32
      $region31: #{tpu_custom_call.1} parent=5 // pred_region
        %s218 = ssub.s32 %s16, 1
        // Predicated region
        $region33: #{tpu_custom_call.1} parent=31 // pred_check
          %p219 = pneg %p54
        $region34: #{tpu_custom_call.1} parent=31 // pred_check_branch
          %221 = sbr.rel (%p219) target = $region36
        $region35: #{tpu_custom_call.1} parent=31 // pred_region
          %223 = dma.done [#allocation3], 4096
        $region36: #{tpu_custom_call.1} parent=31 // pred_fallthru
          _
        %s224 = sand.u32 %s21, 1
        %s225 = scalar_lea.sflag [#allocation6], %s224
        %s226 = sand.u32 %s67, 1
        %s227 = smul.addr %s226, 512
        %s228 = scalar_lea.vmem [#allocation5], %s227
        // Predicated region
        $region37: #{tpu_custom_call.1} parent=31 // pred_check
          %p229 = pneg %p80
        $region38: #{tpu_custom_call.1} parent=31 // pred_check_branch
          %231 = sbr.rel (%p229) target = $region40
        $region39: #{tpu_custom_call.1} parent=31 // pred_region
          %233 = dma.done %s225, 8192
        $region40: #{tpu_custom_call.1} parent=31 // pred_fallthru
          _
        %s234 = sand.u32 %s21, 1
        %s235 = scalar_lea.sflag [#allocation6], %s234
        %s236 = sand.u32 %s93, 1
        %s237 = smul.addr %s236, 2
        %s238 = scalar_lea.vmem [#allocation7], %s237
        // Predicated region
        $region41: #{tpu_custom_call.1} parent=31 // pred_check
          %p239 = pneg %p106
        $region42: #{tpu_custom_call.1} parent=31 // pred_check_branch
          %241 = sbr.rel (%p239) target = $region44
        $region43: #{tpu_custom_call.1} parent=31 // pred_region
          %243 = dma.done %s235, 32
        $region44: #{tpu_custom_call.1} parent=31 // pred_fallthru
          _
        %p244 = pneg %p54
        %p245 = pneg %p51
        %s246 = sand.u32 %s21, 1
        %s247 = scalar_lea.sflag [#allocation6], %s246
        %s248 = sand.u32 %s67, 1
        %s249 = smul.addr %s248, 512
        %s250 = scalar_lea.vmem [#allocation5], %s249
        %p251 = pneg %p80
        %p252 = pneg %p77
        %s253 = sand.u32 %s21, 1
        %s254 = scalar_lea.sflag [#allocation6], %s253
        %s255 = sand.u32 %s93, 1
        %s256 = smul.addr %s255, 2
        %s257 = scalar_lea.vmem [#allocation7], %s256
        %p258 = pneg %p106
        %p259 = pneg %p103
        %p260 = pneg %p134
        %p261 = pneg %p131
        %s262 = sand.u32 %s121, 1
        %s263 = scalar_lea.sflag [#allocation4], %s262
        %s264 = sand.u32 %s121, 1
        %s265 = smul.addr %s264, 256
        %s266 = scalar_lea.vmem [#allocation8], %s265
        %s267 = smul.u32 16, %s25
        %s268 = smul.u32 2, %s26
        %s269 = smul.u32 2, %s26
        %s270 = smul.u32 16, %s25
        %s271 = smul.u32 2, %s26
        %v272 = vld [vmem:[#allocation2] sm:$0xff]
        %v273 = vld [vmem:[#allocation2 + $0x8] sm:$0xff]
        %v274 = vld [vmem:[#allocation2 + $0x10] sm:$0xff]
        %v275 = vld [vmem:[#allocation2 + $0x18] sm:$0xff]
        %v276 = vld [vmem:[#allocation2 + $0x20] sm:$0xff]
        %v277 = vld [vmem:[#allocation2 + $0x28] sm:$0xff]
        %v278 = vld [vmem:[#allocation2 + $0x30] sm:$0xff]
        %v279 = vld [vmem:[#allocation2 + $0x38] sm:$0xff]
        %v280 = vld [vmem:[#allocation2 + $0x40] sm:$0xff]
        %v281 = vld [vmem:[#allocation2 + $0x48] sm:$0xff]
        %v282 = vld [vmem:[#allocation2 + $0x50] sm:$0xff]
        %v283 = vld [vmem:[#allocation2 + $0x58] sm:$0xff]
        %v284 = vld [vmem:[#allocation2 + $0x60] sm:$0xff]
        %v285 = vld [vmem:[#allocation2 + $0x68] sm:$0xff]
        %v286 = vld [vmem:[#allocation2 + $0x70] sm:$0xff]
        %v287 = vld [vmem:[#allocation2 + $0x78] sm:$0xff]
        %v288 = vld [vmem:[#allocation2 + $0x80] sm:$0xff]
        %v289 = vld [vmem:[#allocation2 + $0x88] sm:$0xff]
        %v290 = vld [vmem:[#allocation2 + $0x90] sm:$0xff]
        %v291 = vld [vmem:[#allocation2 + $0x98] sm:$0xff]
        %v292 = vld [vmem:[#allocation2 + $0xa0] sm:$0xff]
        %v293 = vld [vmem:[#allocation2 + $0xa8] sm:$0xff]
        %v294 = vld [vmem:[#allocation2 + $0xb0] sm:$0xff]
        %v295 = vld [vmem:[#allocation2 + $0xb8] sm:$0xff]
        %v296 = vld [vmem:[#allocation2 + $0xc0] sm:$0xff]
        %v297 = vld [vmem:[#allocation2 + $0xc8] sm:$0xff]
        %v298 = vld [vmem:[#allocation2 + $0xd0] sm:$0xff]
        %v299 = vld [vmem:[#allocation2 + $0xd8] sm:$0xff]
        %v300 = vld [vmem:[#allocation2 + $0xe0] sm:$0xff]
        %v301 = vld [vmem:[#allocation2 + $0xe8] sm:$0xff]
        %v302 = vld [vmem:[#allocation2 + $0xf0] sm:$0xff]
        %v303 = vld [vmem:[#allocation2 + $0xf8] sm:$0xff]
        %v304 = vld [vmem:[%s228] sm:$0xff]
        %v305 = vld [vmem:[%s228 + $0x8] sm:$0xff]
        %v306 = vld [vmem:[%s228 + $0x10] sm:$0xff]
        %v307 = vld [vmem:[%s228 + $0x18] sm:$0xff]
        %v308 = vld [vmem:[%s228 + $0x20] sm:$0xff]
        %v309 = vld [vmem:[%s228 + $0x28] sm:$0xff]
        %v310 = vld [vmem:[%s228 + $0x30] sm:$0xff]
        %v311 = vld [vmem:[%s228 + $0x38] sm:$0xff]
        %v312 = vld [vmem:[%s228 + $0x40] sm:$0xff]
        %v313 = vld [vmem:[%s228 + $0x48] sm:$0xff]
        %v314 = vld [vmem:[%s228 + $0x50] sm:$0xff]
        %v315 = vld [vmem:[%s228 + $0x58] sm:$0xff]
        %v316 = vld [vmem:[%s228 + $0x60] sm:$0xff]
        %v317 = vld [vmem:[%s228 + $0x68] sm:$0xff]
        %v318 = vld [vmem:[%s228 + $0x70] sm:$0xff]
        %v319 = vld [vmem:[%s228 + $0x78] sm:$0xff]
        %v320 = vld [vmem:[%s228 + $0x80] sm:$0xff]
        %v321 = vld [vmem:[%s228 + $0x88] sm:$0xff]
        %v322 = vld [vmem:[%s228 + $0x90] sm:$0xff]
        %v323 = vld [vmem:[%s228 + $0x98] sm:$0xff]
        %v324 = vld [vmem:[%s228 + $0xa0] sm:$0xff]
        %v325 = vld [vmem:[%s228 + $0xa8] sm:$0xff]
        %v326 = vld [vmem:[%s228 + $0xb0] sm:$0xff]
        %v327 = vld [vmem:[%s228 + $0xb8] sm:$0xff]
        %v328 = vld [vmem:[%s228 + $0xc0] sm:$0xff]
        %v329 = vld [vmem:[%s228 + $0xc8] sm:$0xff]
        %v330 = vld [vmem:[%s228 + $0xd0] sm:$0xff]
        %v331 = vld [vmem:[%s228 + $0xd8] sm:$0xff]
        %v332 = vld [vmem:[%s228 + $0xe0] sm:$0xff]
        %v333 = vld [vmem:[%s228 + $0xe8] sm:$0xff]
        %v334 = vld [vmem:[%s228 + $0xf0] sm:$0xff]
        %v335 = vld [vmem:[%s228 + $0xf8] sm:$0xff]
        %v336 = vld [vmem:[%s228 + $0x100] sm:$0xff]
        %v337 = vld [vmem:[%s228 + $0x108] sm:$0xff]
        %v338 = vld [vmem:[%s228 + $0x110] sm:$0xff]
        %v339 = vld [vmem:[%s228 + $0x118] sm:$0xff]
        %v340 = vld [vmem:[%s228 + $0x120] sm:$0xff]
        %v341 = vld [vmem:[%s228 + $0x128] sm:$0xff]
        %v342 = vld [vmem:[%s228 + $0x130] sm:$0xff]
        %v343 = vld [vmem:[%s228 + $0x138] sm:$0xff]
        %v344 = vld [vmem:[%s228 + $0x140] sm:$0xff]
        %v345 = vld [vmem:[%s228 + $0x148] sm:$0xff]
        %v346 = vld [vmem:[%s228 + $0x150] sm:$0xff]
        %v347 = vld [vmem:[%s228 + $0x158] sm:$0xff]
        %v348 = vld [vmem:[%s228 + $0x160] sm:$0xff]
        %v349 = vld [vmem:[%s228 + $0x168] sm:$0xff]
        %v350 = vld [vmem:[%s228 + $0x170] sm:$0xff]
        %v351 = vld [vmem:[%s228 + $0x178] sm:$0xff]
        %v352 = vld [vmem:[%s228 + $0x180] sm:$0xff]
        %v353 = vld [vmem:[%s228 + $0x188] sm:$0xff]
        %v354 = vld [vmem:[%s228 + $0x190] sm:$0xff]
        %v355 = vld [vmem:[%s228 + $0x198] sm:$0xff]
        %v356 = vld [vmem:[%s228 + $0x1a0] sm:$0xff]
        %v357 = vld [vmem:[%s228 + $0x1a8] sm:$0xff]
        %v358 = vld [vmem:[%s228 + $0x1b0] sm:$0xff]
        %v359 = vld [vmem:[%s228 + $0x1b8] sm:$0xff]
        %v360 = vld [vmem:[%s228 + $0x1c0] sm:$0xff]
        %v361 = vld [vmem:[%s228 + $0x1c8] sm:$0xff]
        %v362 = vld [vmem:[%s228 + $0x1d0] sm:$0xff]
        %v363 = vld [vmem:[%s228 + $0x1d8] sm:$0xff]
        %v364 = vld [vmem:[%s228 + $0x1e0] sm:$0xff]
        %v365 = vld [vmem:[%s228 + $0x1e8] sm:$0xff]
        %v366 = vld [vmem:[%s228 + $0x1f0] sm:$0xff]
        %v367 = vld [vmem:[%s228 + $0x1f8] sm:$0xff]
        %v368 = vld [vmem:[%s238] sm:$0x3]
        %v370 = vperm.slane %v368, 0
        %v371 = vperm.slane %v368, 1
        %374 = vmatpush.msra.mxu0 %v334
        %375 = vmatpush.msra.mxu0 %v332
        %376 = vmatpush.msra.mxu0 %v330
        %377 = vmatpush.msra.mxu0 %v328
        %378 = vmatpush.msra.mxu0 %v326
        %379 = vmatpush.msra.mxu0 %v324
        %380 = vmatpush.msra.mxu0 %v322
        %381 = vmatpush.msra.mxu0 %v320
        %382 = vmatpush.msra.mxu0 %v318
        %383 = vmatpush.msra.mxu0 %v316
        %384 = vmatpush.msra.mxu0 %v314
        %385 = vmatpush.msra.mxu0 %v312
        %386 = vmatpush.msra.mxu0 %v310
        %387 = vmatpush.msra.mxu0 %v308
        %388 = vmatpush.msra.mxu0 %v306
        %389 = vmatpush.msra.mxu0 %v304
        %390 = vmatmul.f32.gmra.mxu0 %v272
        %v391 = vpop.f32.mrf.mxu0
        %v392 = vadd.f32 %v370, %v391
        %393 = vmatmul.f32.gmra.mxu0 %v274
        %v394 = vpop.f32.mrf.mxu0
        %v395 = vadd.f32 %v370, %v394
        %396 = vmatmul.f32.gmra.mxu0 %v276
        %v397 = vpop.f32.mrf.mxu0
        %v398 = vadd.f32 %v370, %v397
        %399 = vmatmul.f32.gmra.mxu0 %v278
        %v400 = vpop.f32.mrf.mxu0
        %v401 = vadd.f32 %v370, %v400
        %402 = vmatmul.f32.gmra.mxu0 %v280
        %v403 = vpop.f32.mrf.mxu0
        %v404 = vadd.f32 %v370, %v403
        %405 = vmatmul.f32.gmra.mxu0 %v282
        %v406 = vpop.f32.mrf.mxu0
        %v407 = vadd.f32 %v370, %v406
        %408 = vmatmul.f32.gmra.mxu0 %v284
        %v409 = vpop.f32.mrf.mxu0
        %v410 = vadd.f32 %v370, %v409
        %411 = vmatmul.f32.gmra.mxu0 %v286
        %v412 = vpop.f32.mrf.mxu0
        %v413 = vadd.f32 %v370, %v412
        %414 = vmatmul.f32.gmra.mxu0 %v288
        %v415 = vpop.f32.mrf.mxu0
        %v416 = vadd.f32 %v370, %v415
        %417 = vmatmul.f32.gmra.mxu0 %v290
        %v418 = vpop.f32.mrf.mxu0
        %v419 = vadd.f32 %v370, %v418
        %420 = vmatmul.f32.gmra.mxu0 %v292
        %v421 = vpop.f32.mrf.mxu0
        %v422 = vadd.f32 %v370, %v421
        %423 = vmatmul.f32.gmra.mxu0 %v294
        %v424 = vpop.f32.mrf.mxu0
        %v425 = vadd.f32 %v370, %v424
        %426 = vmatmul.f32.gmra.mxu0 %v296
        %v427 = vpop.f32.mrf.mxu0
        %v428 = vadd.f32 %v370, %v427
        %429 = vmatmul.f32.gmra.mxu0 %v298
        %v430 = vpop.f32.mrf.mxu0
        %v431 = vadd.f32 %v370, %v430
        %432 = vmatmul.f32.gmra.mxu0 %v300
        %v433 = vpop.f32.mrf.mxu0
        %v434 = vadd.f32 %v370, %v433
        %435 = vmatmul.f32.gmra.mxu0 %v302
        %v436 = vpop.f32.mrf.mxu0
        %v437 = vadd.f32 %v370, %v436
        %438 = vdwg.mxu0
        %439 = vmatpush.msra.mxu0 %v366
        %440 = vmatpush.msra.mxu0 %v364
        %441 = vmatpush.msra.mxu0 %v362
        %442 = vmatpush.msra.mxu0 %v360
        %443 = vmatpush.msra.mxu0 %v358
        %444 = vmatpush.msra.mxu0 %v356
        %445 = vmatpush.msra.mxu0 %v354
        %446 = vmatpush.msra.mxu0 %v352
        %447 = vmatpush.msra.mxu0 %v350
        %448 = vmatpush.msra.mxu0 %v348
        %449 = vmatpush.msra.mxu0 %v346
        %450 = vmatpush.msra.mxu0 %v344
        %451 = vmatpush.msra.mxu0 %v342
        %452 = vmatpush.msra.mxu0 %v340
        %453 = vmatpush.msra.mxu0 %v338
        %454 = vmatpush.msra.mxu0 %v336
        %455 = vmatmul.f32.gmra.mxu0 %v273
        %v456 = vpop.f32.mrf.mxu0
        %v457 = vadd.f32 %v392, %v456
        %458 = vmatmul.f32.gmra.mxu0 %v275
        %v459 = vpop.f32.mrf.mxu0
        %v460 = vadd.f32 %v395, %v459
        %461 = vmatmul.f32.gmra.mxu0 %v277
        %v462 = vpop.f32.mrf.mxu0
        %v463 = vadd.f32 %v398, %v462
        %464 = vmatmul.f32.gmra.mxu0 %v279
        %v465 = vpop.f32.mrf.mxu0
        %v466 = vadd.f32 %v401, %v465
        %467 = vmatmul.f32.gmra.mxu0 %v281
        %v468 = vpop.f32.mrf.mxu0
        %v469 = vadd.f32 %v404, %v468
        %470 = vmatmul.f32.gmra.mxu0 %v283
        %v471 = vpop.f32.mrf.mxu0
        %v472 = vadd.f32 %v407, %v471
        %473 = vmatmul.f32.gmra.mxu0 %v285
        %v474 = vpop.f32.mrf.mxu0
        %v475 = vadd.f32 %v410, %v474
        %476 = vmatmul.f32.gmra.mxu0 %v287
        %v477 = vpop.f32.mrf.mxu0
        %v478 = vadd.f32 %v413, %v477
        %479 = vmatmul.f32.gmra.mxu0 %v289
        %v480 = vpop.f32.mrf.mxu0
        %v481 = vadd.f32 %v416, %v480
        %482 = vmatmul.f32.gmra.mxu0 %v291
        %v483 = vpop.f32.mrf.mxu0
        %v484 = vadd.f32 %v419, %v483
        %485 = vmatmul.f32.gmra.mxu0 %v293
        %v486 = vpop.f32.mrf.mxu0
        %v487 = vadd.f32 %v422, %v486
        %488 = vmatmul.f32.gmra.mxu0 %v295
        %v489 = vpop.f32.mrf.mxu0
        %v490 = vadd.f32 %v425, %v489
        %491 = vmatmul.f32.gmra.mxu0 %v297
        %v492 = vpop.f32.mrf.mxu0
        %v493 = vadd.f32 %v428, %v492
        %494 = vmatmul.f32.gmra.mxu0 %v299
        %v495 = vpop.f32.mrf.mxu0
        %v496 = vadd.f32 %v431, %v495
        %497 = vmatmul.f32.gmra.mxu0 %v301
        %v498 = vpop.f32.mrf.mxu0
        %v499 = vadd.f32 %v434, %v498
        %500 = vmatmul.f32.gmra.mxu0 %v303
        %v501 = vpop.f32.mrf.mxu0
        %v502 = vadd.f32 %v437, %v501
        %503 = vdwg.mxu0
        %504 = vmatpush.msra.mxu0 %v335
        %505 = vmatpush.msra.mxu0 %v333
        %506 = vmatpush.msra.mxu0 %v331
        %507 = vmatpush.msra.mxu0 %v329
        %508 = vmatpush.msra.mxu0 %v327
        %509 = vmatpush.msra.mxu0 %v325
        %510 = vmatpush.msra.mxu0 %v323
        %511 = vmatpush.msra.mxu0 %v321
        %512 = vmatpush.msra.mxu0 %v319
        %513 = vmatpush.msra.mxu0 %v317
        %514 = vmatpush.msra.mxu0 %v315
        %515 = vmatpush.msra.mxu0 %v313
        %516 = vmatpush.msra.mxu0 %v311
        %517 = vmatpush.msra.mxu0 %v309
        %518 = vmatpush.msra.mxu0 %v307
        %519 = vmatpush.msra.mxu0 %v305
        %520 = vmatmul.f32.gmra.mxu0 %v272
        %v521 = vpop.f32.mrf.mxu0
        %v522 = vadd.f32 %v371, %v521
        %523 = vmatmul.f32.gmra.mxu0 %v274
        %v524 = vpop.f32.mrf.mxu0
        %v525 = vadd.f32 %v371, %v524
        %526 = vmatmul.f32.gmra.mxu0 %v276
        %v527 = vpop.f32.mrf.mxu0
        %v528 = vadd.f32 %v371, %v527
        %529 = vmatmul.f32.gmra.mxu0 %v278
        %v530 = vpop.f32.mrf.mxu0
        %v531 = vadd.f32 %v371, %v530
        %532 = vmatmul.f32.gmra.mxu0 %v280
        %v533 = vpop.f32.mrf.mxu0
        %v534 = vadd.f32 %v371, %v533
        %535 = vmatmul.f32.gmra.mxu0 %v282
        %v536 = vpop.f32.mrf.mxu0
        %v537 = vadd.f32 %v371, %v536
        %538 = vmatmul.f32.gmra.mxu0 %v284
        %v539 = vpop.f32.mrf.mxu0
        %v540 = vadd.f32 %v371, %v539
        %541 = vmatmul.f32.gmra.mxu0 %v286
        %v542 = vpop.f32.mrf.mxu0
        %v543 = vadd.f32 %v371, %v542
        %544 = vmatmul.f32.gmra.mxu0 %v288
        %v545 = vpop.f32.mrf.mxu0
        %v546 = vadd.f32 %v371, %v545
        %547 = vmatmul.f32.gmra.mxu0 %v290
        %v548 = vpop.f32.mrf.mxu0
        %v549 = vadd.f32 %v371, %v548
        %550 = vmatmul.f32.gmra.mxu0 %v292
        %v551 = vpop.f32.mrf.mxu0
        %v552 = vadd.f32 %v371, %v551
        %553 = vmatmul.f32.gmra.mxu0 %v294
        %v554 = vpop.f32.mrf.mxu0
        %v555 = vadd.f32 %v371, %v554
        %556 = vmatmul.f32.gmra.mxu0 %v296
        %v557 = vpop.f32.mrf.mxu0
        %v558 = vadd.f32 %v371, %v557
        %559 = vmatmul.f32.gmra.mxu0 %v298
        %v560 = vpop.f32.mrf.mxu0
        %v561 = vadd.f32 %v371, %v560
        %562 = vmatmul.f32.gmra.mxu0 %v300
        %v563 = vpop.f32.mrf.mxu0
        %v564 = vadd.f32 %v371, %v563
        %565 = vmatmul.f32.gmra.mxu0 %v302
        %v566 = vpop.f32.mrf.mxu0
        %v567 = vadd.f32 %v371, %v566
        %568 = vdwg.mxu0
        %569 = vmatpush.msra.mxu0 %v367
        %570 = vmatpush.msra.mxu0 %v365
        %571 = vmatpush.msra.mxu0 %v363
        %572 = vmatpush.msra.mxu0 %v361
        %573 = vmatpush.msra.mxu0 %v359
        %574 = vmatpush.msra.mxu0 %v357
        %575 = vmatpush.msra.mxu0 %v355
        %576 = vmatpush.msra.mxu0 %v353
        %577 = vmatpush.msra.mxu0 %v351
        %578 = vmatpush.msra.mxu0 %v349
        %579 = vmatpush.msra.mxu0 %v347
        %580 = vmatpush.msra.mxu0 %v345
        %581 = vmatpush.msra.mxu0 %v343
        %582 = vmatpush.msra.mxu0 %v341
        %583 = vmatpush.msra.mxu0 %v339
        %584 = vmatpush.msra.mxu0 %v337
        %585 = vmatmul.f32.gmra.mxu0 %v273
        %v586 = vpop.f32.mrf.mxu0
        %v587 = vadd.f32 %v522, %v586
        %588 = vmatmul.f32.gmra.mxu0 %v275
        %v589 = vpop.f32.mrf.mxu0
        %v590 = vadd.f32 %v525, %v589
        %591 = vmatmul.f32.gmra.mxu0 %v277
        %v592 = vpop.f32.mrf.mxu0
        %v593 = vadd.f32 %v528, %v592
        %594 = vmatmul.f32.gmra.mxu0 %v279
        %v595 = vpop.f32.mrf.mxu0
        %v596 = vadd.f32 %v531, %v595
        %597 = vmatmul.f32.gmra.mxu0 %v281
        %v598 = vpop.f32.mrf.mxu0
        %v599 = vadd.f32 %v534, %v598
        %600 = vmatmul.f32.gmra.mxu0 %v283
        %v601 = vpop.f32.mrf.mxu0
        %v602 = vadd.f32 %v537, %v601
        %603 = vmatmul.f32.gmra.mxu0 %v285
        %v604 = vpop.f32.mrf.mxu0
        %v605 = vadd.f32 %v540, %v604
        %606 = vmatmul.f32.gmra.mxu0 %v287
        %v607 = vpop.f32.mrf.mxu0
        %v608 = vadd.f32 %v543, %v607
        %609 = vmatmul.f32.gmra.mxu0 %v289
        %v610 = vpop.f32.mrf.mxu0
        %v611 = vadd.f32 %v546, %v610
        %612 = vmatmul.f32.gmra.mxu0 %v291
        %v613 = vpop.f32.mrf.mxu0
        %v614 = vadd.f32 %v549, %v613
        %615 = vmatmul.f32.gmra.mxu0 %v293
        %v616 = vpop.f32.mrf.mxu0
        %v617 = vadd.f32 %v552, %v616
        %618 = vmatmul.f32.gmra.mxu0 %v295
        %v619 = vpop.f32.mrf.mxu0
        %v620 = vadd.f32 %v555, %v619
        %621 = vmatmul.f32.gmra.mxu0 %v297
        %v622 = vpop.f32.mrf.mxu0
        %v623 = vadd.f32 %v558, %v622
        %624 = vmatmul.f32.gmra.mxu0 %v299
        %v625 = vpop.f32.mrf.mxu0
        %v626 = vadd.f32 %v561, %v625
        %627 = vmatmul.f32.gmra.mxu0 %v301
        %v628 = vpop.f32.mrf.mxu0
        %v629 = vadd.f32 %v564, %v628
        %630 = vmatmul.f32.gmra.mxu0 %v303
        %v631 = vpop.f32.mrf.mxu0
        %v632 = vadd.f32 %v567, %v631
        %633 = vdwg.mxu0
        %634 = vst [vmem:[%s266] sm:$0xff] %v457
        %635 = vst [vmem:[%s266 + $0x8] sm:$0xff] %v587
        %636 = vst [vmem:[%s266 + $0x10] sm:$0xff] %v460
        %637 = vst [vmem:[%s266 + $0x18] sm:$0xff] %v590
        %638 = vst [vmem:[%s266 + $0x20] sm:$0xff] %v463
        %639 = vst [vmem:[%s266 + $0x28] sm:$0xff] %v593
        %640 = vst [vmem:[%s266 + $0x30] sm:$0xff] %v466
        %641 = vst [vmem:[%s266 + $0x38] sm:$0xff] %v596
        %642 = vst [vmem:[%s266 + $0x40] sm:$0xff] %v469
        %643 = vst [vmem:[%s266 + $0x48] sm:$0xff] %v599
        %644 = vst [vmem:[%s266 + $0x50] sm:$0xff] %v472
        %645 = vst [vmem:[%s266 + $0x58] sm:$0xff] %v602
        %646 = vst [vmem:[%s266 + $0x60] sm:$0xff] %v475
        %647 = vst [vmem:[%s266 + $0x68] sm:$0xff] %v605
        %648 = vst [vmem:[%s266 + $0x70] sm:$0xff] %v478
        %649 = vst [vmem:[%s266 + $0x78] sm:$0xff] %v608
        %650 = vst [vmem:[%s266 + $0x80] sm:$0xff] %v481
        %651 = vst [vmem:[%s266 + $0x88] sm:$0xff] %v611
        %652 = vst [vmem:[%s266 + $0x90] sm:$0xff] %v484
        %653 = vst [vmem:[%s266 + $0x98] sm:$0xff] %v614
        %654 = vst [vmem:[%s266 + $0xa0] sm:$0xff] %v487
        %655 = vst [vmem:[%s266 + $0xa8] sm:$0xff] %v617
        %656 = vst [vmem:[%s266 + $0xb0] sm:$0xff] %v490
        %657 = vst [vmem:[%s266 + $0xb8] sm:$0xff] %v620
        %658 = vst [vmem:[%s266 + $0xc0] sm:$0xff] %v493
        %659 = vst [vmem:[%s266 + $0xc8] sm:$0xff] %v623
        %660 = vst [vmem:[%s266 + $0xd0] sm:$0xff] %v496
        %661 = vst [vmem:[%s266 + $0xd8] sm:$0xff] %v626
        %662 = vst [vmem:[%s266 + $0xe0] sm:$0xff] %v499
        %663 = vst [vmem:[%s266 + $0xe8] sm:$0xff] %v629
        %664 = vst [vmem:[%s266 + $0xf0] sm:$0xff] %v502
        %665 = vst [vmem:[%s266 + $0xf8] sm:$0xff] %v632
        %s666 = sand.u32 %s121, 1
        %s667 = scalar_lea.sflag [#allocation4], %s666
        %s668 = sand.u32 %s121, 1
        %s669 = smul.addr %s668, 256
        %s670 = scalar_lea.vmem [#allocation8], %s669
        // Predicated region
        $region45: #{tpu_custom_call.1} parent=31 // pred_check
          %p671 = pneg %p131
        $region46: #{tpu_custom_call.1} parent=31 // pred_check_branch
          %673 = sbr.rel (%p671) target = $region48
        $region47: #{tpu_custom_call.1} parent=31 // pred_region
          %s674 = smul.u32 16, %s25
          %s675 = smul.u32 2, %s26
          %677 = vsyncadd %s667, 0
          %s678 = smul.addr %s674, 4
          %s679 = sadd.s32 %s675, %s678
          %s680 = smul.addr %s679, 8
          %s681 = scalar_lea.hbm %s3, %s680
          %s682 = sshll.u32 %s670, 4
          %s683 = int_to_ptr.vmem [resolvable:$true] %s682
          %s684 = sshll.u32 %s681, 4
          %s685 = int_to_ptr.hbm [resolvable:$true] %s684
          %690 = dma.vmem_to_hbm [thread:$0]  %s683, 4096, %s685, %s667, 256, 512, 16
        $region48: #{tpu_custom_call.1} parent=31 // pred_fallthru
          _
      $region32: #{tpu_custom_call.1} parent=5 // pred_fallthru
        _
      %p691 = scmp.le.s32.totalorder 2, %s16
      // Predicated region
      $region49: #{tpu_custom_call.1} parent=5 // pred_check
        %p692 = pneg %p691
      $region50: #{tpu_custom_call.1} parent=5 // pred_check_branch
        %694 = sbr.rel (%p692) target = $region52
      $region51: #{tpu_custom_call.1} parent=5 // pred_region
        %s695 = ssub.s32 %s16, 2
        // Predicated region
        $region53: #{tpu_custom_call.1} parent=51 // pred_check
          %p696 = pneg %p137
        $region54: #{tpu_custom_call.1} parent=51 // pred_check_branch
          %698 = sbr.rel (%p696) target = $region56
        $region55: #{tpu_custom_call.1} parent=51 // pred_region
          %s699 = sand.u32 %s122, 1
          %s700 = scalar_lea.sflag [#allocation4], %s699
          %s701 = sand.u32 %s122, 1
          %s702 = smul.addr %s701, 256
          %s703 = scalar_lea.vmem [#allocation8], %s702
          %705 = dma.done %s700, 4096
        $region56: #{tpu_custom_call.1} parent=51 // pred_fallthru
          _
      $region52: #{tpu_custom_call.1} parent=5 // pred_fallthru
        _
    $region6: #{tpu_custom_call.1} parent=1 // loop_footer
      %s20 = sadd.s32 1, %s16
    $region7: #{tpu_custom_call.1} parent=1 // loop_footer_branch
      %15 = sbr.rel target = $region3
    $region8: #{tpu_custom_call.1} parent=1 // loop_exit
      _
    %706 = vsyncpa [#allocation3], 1
    %s707 = scalar_lea.sflag [#allocation3], 1
    %708 = vsyncpa %s707, 1
    %709 = vsyncpa [#allocation6], 1
    %s710 = scalar_lea.sflag [#allocation6], 1
    %711 = vsyncpa %s710, 1
    %712 = vsyncpa [#allocation4], 1
    %s713 = scalar_lea.sflag [#allocation4], 1
    %714 = vsyncpa %s713, 1

</llo_original>
